<compile_context>
chip_gen: v7x
topology: tpu7x:2x2x1
jax: 0.10.0
libtpu: 0.0.40
codegen_flags: <defaults>
</compile_context>

<pallas_src>
import jax
import jax.numpy as jnp
from jax import lax
from jax.experimental import pallas as pl
from jax.experimental.pallas import tpu as pltpu


# --------------------------------------------------------------------------- #
# Kernel bodies
# --------------------------------------------------------------------------- #
def _select_pooled(xe, xo, out_dtype):
    """Given even/odd element planes of one tile, build the per-channel output."""
    avg = (xe + xo) * 0.5                  # AvgPool1d(2, 2)
    mx = jnp.maximum(xe, xo)               # MaxPool1d(2, 2)
    mn = jnp.minimum(xe, xo)               # -MaxPool1d(-x) == min-pool

    # Rows are (batch*16 + channel) and every row block starts at a multiple of
    # 16 (asserted in _tiles), so channel id == local row index mod 16.  A
    # sublane-only (tr, 1) iota is enough; it broadcasts inside the wheres.
    tr = xe.shape[0]
    ch = lax.broadcasted_iota(jnp.int32, (tr, 1), 0) & 15

    out = jnp.where(ch == 5, xe, avg)                  # even subsample
    out = jnp.where((ch == 6) | (ch == 9), xo, out)    # odd subsample
    out = jnp.where(ch == 7, mx, out)                  # max-pool
    out = jnp.where(ch == 8, mn, out)                  # min-pool
    return out.astype(out_dtype)


def _ori_pool_packed_bf16_kernel(p_ref, o_ref):
    """bf16 path: each uint32 lane holds one (even, odd) bf16 pair."""
    p = p_ref[...]                                            # (TR, TL) uint32
    # even bf16 occupies the low 16 bits, odd the high 16 bits (little-endian
    # pack from lax.bitcast_convert_type).  A bf16 value placed in the top 16
    # bits of an f32 word IS that value, so the unpack is exact and pure VPU.
    xe = pltpu.bitcast(p << 16, jnp.float32)                  # even elements
    xo = pltpu.bitcast(p & jnp.uint32(0xFFFF0000), jnp.float32)  # odd elements
    o_ref[...] = _select_pooled(xe, xo, o_ref.dtype)


def _ori_pool_stacked_kernel(x_ref, o_ref):
    """Generic path: input block is (2, TR, TL) with [even, odd] planes."""
    xe = x_ref[0]
    xo = x_ref[1]
    o_ref[...] = _select_pooled(xe, xo, o_ref.dtype)


# --------------------------------------------------------------------------- #
# Tiling / VMEM policy
# --------------------------------------------------------------------------- #
def _vmem_budget_and_limit():
    """Per-generation (budget, vmem_limit_bytes) for the double-buffered tiles."""
    mib = 1024 * 1024
    try:
        info = pltpu.get_tpu_info()
        vmem_cap = int(getattr(info, "vmem_capacity_bytes", 128 * mib))
    except Exception:
        vmem_cap = 128 * mib
    if vmem_cap <= 64 * mib:
        # v7x: 64 MiB physical per TC -> stay at ~half of it, big tiles to
        # amortize the ~0.35 us per-grid-step overhead against 3.2 TB/s HBM.
        return 20 * mib, 32 * mib
    # v5e / v6e: 128 MiB physical; raise the scoped limit explicitly so the
    # 16 MiB budget is safe even on v5e's 16 MiB default.
    return 16 * mib, 32 * mib


def _tiles(num_rows, pooled_len, bytes_per_lane_elem, vmem_budget):
    """Pick (row_tile, lane_tile) for the (B*16, L//2) problem."""
    # Row tile: as many sublanes as possible (cap 256).  num_rows = 16*B so the
    # block row offset is always a multiple of 16 -> `row & 15` channel mapping.
    tr = num_rows if num_rows <= 256 else 256
    assert tr % 16 == 0, "row tile must be a multiple of 16 for channel recovery"

    # Lane tile: multiple of 128 (or the whole pooled length when short), sized
    # so the double-buffered in+out blocks fit the per-generation budget.
    per_lane = tr * bytes_per_lane_elem * 2          # double-buffered
    max_tl = max(128, (vmem_budget // per_lane) // 128 * 128)
    tl = pooled_len if pooled_len <= max_tl else max_tl

    # If the row axis has only one grid step (R <= 256), keep >= 2 lane-grid
    # steps (when possible) so both v7x TensorCores have work to shard.
    if num_rows <= tr and pooled_len >= 256:
        tl = min(tl, max(128, (pooled_len // 2) // 128 * 128))
    return tr, tl


# --------------------------------------------------------------------------- #
# Wrapper
# --------------------------------------------------------------------------- #
def ori_data_pool(x, kernel_size=2, stride=2):
    """Pallas TPU implementation of OriDataPool.forward for kernel_size=stride=2."""
    assert kernel_size == 2 and stride == 2, "only the default (2, 2) config is implemented"
    B, C, L = x.shape
    assert C >= 16, "forward consumes exactly 16 channels"
    assert L % 2 == 0, "length must be even so every pooled branch has length L//2"
    Lh = L // 2
    R = B * 16

    # For C > 16 the channel slice fuses into the single producer below
    # (bitcast / transpose), so it does not add a separate HBM pass.
    x16 = x[:, :16, :] if C > 16 else x
    pairs = x16.reshape(R, Lh, 2)   # free reshape: (even, odd) adjacent on last axis

    if x.dtype == jnp.bfloat16:
        # Pure bit-reinterpretation: one uint32 lane per (even, odd) bf16 pair.
        packed = lax.bitcast_convert_type(pairs, jnp.uint32)      # (R, Lh)
        in_arrays = (packed,)
        in_elem_bytes = 4
        kernel = _ori_pool_packed_bf16_kernel

        def make_in_specs(tr, tl):
            return [pl.BlockSpec((tr, tl), lambda r, l: (r, l))]
    else:
        # TODO(synk): replace this single transpose producer with an in-kernel
        # lane-stride-2 load (pl.ds(..., stride=2)) once it lowers reliably.
        xs = jnp.moveaxis(pairs, -1, 0)                           # (2, R, Lh)
        in_arrays = (xs,)
        in_elem_bytes = 2 * x.dtype.itemsize
        kernel = _ori_pool_stacked_kernel

        def make_in_specs(tr, tl):
            return [pl.BlockSpec((2, tr, tl), lambda r, l: (0, r, l))]

    out_elem_bytes = x.dtype.itemsize
    budget, vmem_limit = _vmem_budget_and_limit()
    tr, tl = _tiles(R, Lh, in_elem_bytes + out_elem_bytes, budget)
    grid = (pl.cdiv(R, tr), pl.cdiv(Lh, tl))

    cost = pl.CostEstimate(
        flops=4 * R * Lh,
        transcendentals=0,
        bytes_accessed=int(R * Lh * (in_elem_bytes + out_elem_bytes)),
    )

    out2d = pl.pallas_call(
        kernel,
        out_shape=jax.ShapeDtypeStruct((R, Lh), x.dtype),
        grid=grid,
        in_specs=make_in_specs(tr, tl),
        out_specs=pl.BlockSpec((tr, tl), lambda r, l: (r, l)),
        compiler_params=pltpu.CompilerParams(
            dimension_semantics=("parallel", "parallel"),
            vmem_limit_bytes=vmem_limit),
        cost_estimate=cost,
    )(*in_arrays)

    return out2d.reshape(B, 16, Lh)


# --------------------------------------------------------------------------- #
# Pure-JAX reference + self-test
# --------------------------------------------------------------------------- #
def _reference(x, stride=2):
    """Pure-JAX reference mirroring the PyTorch forward, for verification."""
    B, C, L = x.shape
    xr = x.reshape(B, C, L // stride, stride)
    pools = []
    for k in range(0, 5):
        pools.append(xr[:, k:k + 1].mean(-1))
    pools.append(x[:, 5:6, ::stride])
    pools.append(x[:, 6:7, stride - 1::stride])
    pools.append(xr[:, 7:8].max(-1))
    pools.append(xr[:, 8:9].min(-1))
    pools.append(x[:, 9:10, 1::stride])
    for k in range(10, 16):
        pools.append(xr[:, k:k + 1].mean(-1))
    return jnp.concatenate(pools, axis=1)


if __name__ == "__main__":
    key = jax.random.PRNGKey(0)
    B, C, L = 2, 16, 256          # output (2, 16, 128)
    x = jax.random.normal(key, (B, C, L), dtype=jnp.float32)

    # f32 path (stacked single-producer input).
    out = jax.block_until_ready(ori_data_pool(x))
    ref = _reference(x)
    assert out.shape == ref.shape == (B, 16, L // 2)
    assert jnp.allclose(out, ref, atol=1e-6), "f32 Pallas output mismatch vs reference"

    # bf16 path (packed-u32 in-kernel unpack; avg accumulates in f32 before the
    # final round to bf16, so allow a 1-ulp bf16 tolerance).
    xb = x.astype(jnp.bfloat16)
    out_b = jax.block_until_ready(ori_data_pool(xb))
    ref_b = _reference(xb.astype(jnp.float32)).astype(jnp.bfloat16)
    assert out_b.dtype == jnp.bfloat16 and out_b.shape == (B, 16, L // 2)
    assert jnp.allclose(out_b.astype(jnp.float32), ref_b.astype(jnp.float32),
                        atol=1e-2, rtol=1e-2), "bf16 Pallas output mismatch vs reference"

    print("KERNEL_OK")
</pallas_src>

<mosaic_0001>
module attributes {stable_mosaic.version = 11 : i64} {
  func.func @_ori_pool_stacked_kernel(%arg0: i32, %arg1: i32, %arg2: memref<2x32x128xf32, #tpu.memory_space<vmem>>, %arg3: memref<32x128xf32, #tpu.memory_space<vmem>>) attributes {dimension_semantics = [#tpu.dimension_semantics<parallel>, #tpu.dimension_semantics<parallel>], iteration_bounds = array<i64: 1, 1>, scalar_prefetch = 0 : i64, scratch_operands = 0 : i64, tpu.core_type = #tpu.core_type<tc>, window_params = [{transform_indices = @transform_0, window_bounds = array<i64: 2, 32, 128>}, {transform_indices = @transform_1, window_bounds = array<i64: 32, 128>}]} {
    %c0 = arith.constant 0 : index
    %c0_0 = arith.constant 0 : index
    %c0_1 = arith.constant 0 : index
    %0 = vector.load %arg2[%c0, %c0_0, %c0_1] : memref<2x32x128xf32, #tpu.memory_space<vmem>>, vector<1x32x128xf32>
    %1 = vector.shape_cast %0 : vector<1x32x128xf32> to vector<32x128xf32>
    %c1 = arith.constant 1 : index
    %c0_2 = arith.constant 0 : index
    %c0_3 = arith.constant 0 : index
    %2 = vector.load %arg2[%c1, %c0_2, %c0_3] : memref<2x32x128xf32, #tpu.memory_space<vmem>>, vector<1x32x128xf32>
    %3 = vector.shape_cast %2 : vector<1x32x128xf32> to vector<32x128xf32>
    %4 = arith.addf %1, %3 : vector<32x128xf32>
    %cst = arith.constant 5.000000e-01 : f32
    %5 = vector.broadcast %cst : f32 to vector<32x128xf32>
    %6 = arith.mulf %4, %5 : vector<32x128xf32>
    %7 = arith.maximumf %1, %3 : vector<32x128xf32>
    %8 = arith.minimumf %1, %3 : vector<32x128xf32>
    %9 = tpu.iota {dimensions = array<i32: 0>} : vector<32x1xi32>
    %c15_i32 = arith.constant 15 : i32
    %10 = vector.broadcast %c15_i32 : i32 to vector<32x1xi32>
    %11 = arith.andi %9, %10 : vector<32x1xi32>
    %c5_i32 = arith.constant 5 : i32
    %12 = vector.broadcast %c5_i32 : i32 to vector<32x1xi32>
    %13 = arith.cmpi eq, %11, %12 : vector<32x1xi32>
    %14 = vector.shape_cast %13 : vector<32x1xi1> to vector<32x1xi1>
    %15 = vector.broadcast %14 : vector<32x1xi1> to vector<32x128xi1>
    %16 = arith.select %15, %1, %6 : vector<32x128xi1>, vector<32x128xf32>
    %c6_i32 = arith.constant 6 : i32
    %17 = vector.broadcast %c6_i32 : i32 to vector<32x1xi32>
    %18 = arith.cmpi eq, %11, %17 : vector<32x1xi32>
    %c9_i32 = arith.constant 9 : i32
    %19 = vector.broadcast %c9_i32 : i32 to vector<32x1xi32>
    %20 = arith.cmpi eq, %11, %19 : vector<32x1xi32>
    %21 = arith.ori %18, %20 : vector<32x1xi1>
    %22 = vector.shape_cast %21 : vector<32x1xi1> to vector<32x1xi1>
    %23 = vector.broadcast %22 : vector<32x1xi1> to vector<32x128xi1>
    %24 = arith.select %23, %3, %16 : vector<32x128xi1>, vector<32x128xf32>
    %c7_i32 = arith.constant 7 : i32
    %25 = vector.broadcast %c7_i32 : i32 to vector<32x1xi32>
    %26 = arith.cmpi eq, %11, %25 : vector<32x1xi32>
    %27 = vector.shape_cast %26 : vector<32x1xi1> to vector<32x1xi1>
    %28 = vector.broadcast %27 : vector<32x1xi1> to vector<32x128xi1>
    %29 = arith.select %28, %7, %24 : vector<32x128xi1>, vector<32x128xf32>
    %c8_i32 = arith.constant 8 : i32
    %30 = vector.broadcast %c8_i32 : i32 to vector<32x1xi32>
    %31 = arith.cmpi eq, %11, %30 : vector<32x1xi32>
    %32 = vector.shape_cast %31 : vector<32x1xi1> to vector<32x1xi1>
    %33 = vector.broadcast %32 : vector<32x1xi1> to vector<32x128xi1>
    %34 = arith.select %33, %8, %29 : vector<32x128xi1>, vector<32x128xf32>
    %c0_4 = arith.constant 0 : index
    %c0_5 = arith.constant 0 : index
    %35 = vector.load %arg3[%c0_4, %c0_5] : memref<32x128xf32, #tpu.memory_space<vmem>>, vector<32x128xf32>
    tpu.vector_store %arg3[%c0_4, %c0_5], %34 {strides = array<i32>} : memref<32x128xf32, #tpu.memory_space<vmem>>, vector<32x128xf32>,
    return
  }
  func.func @transform_0(%arg0: i32, %arg1: i32) -> (i32, i32, i32) {
    %c0_i32 = arith.constant 0 : i32
    %c0_i32_0 = arith.constant 0 : i32
    return %c0_i32, %arg0, %arg1 : i32, i32, i32
  }
  func.func @transform_1(%arg0: i32, %arg1: i32) -> (i32, i32) {
    %c0_i32 = arith.constant 0 : i32
    return %arg0, %arg1 : i32, i32
  }
}

</mosaic_0001>

<llo_original>
// kernel: tpu_custom_call.1
$region0: #{tpu_custom_call.1}
  #allocation0 [shape = 'u32[]', space=smem, size = 0x4, offset = 0x4, fixed_abs, tag = 'smem constant byte address 0x4 - core index']
  #allocation1 [shape = 'u32[144,128]{1,0:T(1,128)}', space=vmem, size = 0x12000, scoped, tag = 'internal scratch']
  %s0 = inlined_call_operand.hbm [shape: f32[2,32,128], index: 0, kind: input, shape index: {}]
  %s1 = inlined_call_operand.hbm [shape: f32[32,128], index: 1, kind: output, shape index: {}]
  %s2 = sld [smem:[#allocation0]]
  $region18: #{tpu_custom_call.1} parent=0
    _
  %s4 = ssub.s32 1, %s2
  %s5 = scalar_select 0, %s4, %s2
  $region1: #{tpu_custom_call.1} parent=0
    #allocation2 [shape = 'u8[32768]{0}', space=vmem, size = 0x8000, scoped, tag = 'input window, operand 0, single buffered']
    #allocation3 [shape = 's32[1]{0}', space=sflag, size = 0x4, scoped, tag = 'scoped memory for tpu_custom_call.1']
    #allocation4 [shape = 's32[1]{0}', space=sflag, size = 0x4, scoped, tag = 'scoped memory for tpu_custom_call.1']
    #allocation5 [shape = 'u8[16384]{0}', space=vmem, size = 0x4000, scoped, tag = 'output window, operand 0, single buffered']
    %6 = vsyncpa [#allocation3], 0
    %7 = vsyncpa [#allocation4], 0
    // Predicated region
    $region2: #{tpu_custom_call.1} parent=1 // pred_check
      _
    $region3: #{tpu_custom_call.1} parent=1 // pred_check_branch
      %9 = sbr.rel (0) target = $region5
    $region4: #{tpu_custom_call.1} parent=1 // pred_region
      %s11 = ssub.s32 1024, 1024
      %12 = vsyncadd [#allocation3], %s11
      %s13 = sshll.u32 [#allocation2], 4
      %s14 = int_to_ptr.vmem [resolvable:$true] %s13
      %19 = dma.hbm_to_vmem [thread:$0]  %s0, 1024, %s14, [#allocation3], 128, 128, 8
    $region5: #{tpu_custom_call.1} parent=1 // pred_fallthru
      _
    // Predicated region
    $region6: #{tpu_custom_call.1} parent=1 // pred_check
      _
    $region7: #{tpu_custom_call.1} parent=1 // pred_check_branch
      %21 = sbr.rel (0) target = $region9
    $region8: #{tpu_custom_call.1} parent=1 // pred_region
      %22 = dma.done [#allocation3], 1024
    $region9: #{tpu_custom_call.1} parent=1 // pred_fallthru
      _
    %v23 = vld [vmem:[#allocation2] sm:$0xff]
    %v24 = vld [vmem:[#allocation2 + $0x8] sm:$0xff]
    %v25 = vld [vmem:[#allocation2 + $0x10] sm:$0xff]
    %v26 = vld [vmem:[#allocation2 + $0x18] sm:$0xff]
    %s27 = scalar_lea.vmem [#allocation2], 32
    %v28 = vld [vmem:[%s27] sm:$0xff]
    %v29 = vld [vmem:[%s27 + $0x8] sm:$0xff]
    %v30 = vld [vmem:[%s27 + $0x10] sm:$0xff]
    %v31 = vld [vmem:[%s27 + $0x18] sm:$0xff]
    %v32 = vadd.f32 %v23, %v28
    %v33 = vadd.f32 %v24, %v29
    %v34 = vadd.f32 %v25, %v30
    %v35 = vadd.f32 %v26, %v31
    %v36 = vmul.f32 %v32, 0.5
    %v37 = vmul.f32 %v33, 0.5
    %v38 = vmul.f32 %v34, 0.5
    %v39 = vmul.f32 %v35, 0.5
    %v40 = vmax.f32 %v23, %v28
    %v41 = vmax.f32 %v24, %v29
    %v42 = vmax.f32 %v25, %v30
    %v43 = vmax.f32 %v26, %v31
    %v44 = vmin.f32 %v23, %v28
    %v45 = vmin.f32 %v24, %v29
    %v46 = vmin.f32 %v25, %v30
    %v47 = vmin.f32 %v26, %v31
    %v48 = vlaneseq
    %v49 = vshrl.u32 %v48, 7
    %v50 = vadd.s32 %v49, 8
    %v51 = vadd.s32 %v49, 16
    %v52 = vadd.s32 %v49, 24
    %v53 = vand.u32 %v49, 15
    %v54 = vand.u32 %v50, 15
    %v55 = vand.u32 %v51, 15
    %v56 = vand.u32 %v52, 15
    %vm57 = vcmp.eq.s32.totalorder %v53, 5
    %vm58 = vcmp.eq.s32.totalorder %v54, 5
    %vm59 = vcmp.eq.s32.totalorder %v55, 5
    %vm60 = vcmp.eq.s32.totalorder %v56, 5
    %v61 = vsel %vm57, 1, 0
    %v62 = vsel %vm58, 1, 0
    %v63 = vsel %vm59, 1, 0
    %v64 = vsel %vm60, 1, 0
    %vm65 = vcmp.eq.s32.totalorder %v61, 1
    %vm66 = vcmp.eq.s32.totalorder %v62, 1
    %vm67 = vcmp.eq.s32.totalorder %v63, 1
    %vm68 = vcmp.eq.s32.totalorder %v64, 1
    %v69 = vsel %vm65, %v23, %v36
    %v70 = vsel %vm66, %v24, %v37
    %v71 = vsel %vm67, %v25, %v38
    %v72 = vsel %vm68, %v26, %v39
    %vm73 = vcmp.eq.s32.totalorder %v53, 6
    %vm74 = vcmp.eq.s32.totalorder %v54, 6
    %vm75 = vcmp.eq.s32.totalorder %v55, 6
    %vm76 = vcmp.eq.s32.totalorder %v56, 6
    %vm77 = vcmp.eq.s32.totalorder %v53, 9
    %vm78 = vcmp.eq.s32.totalorder %v54, 9
    %vm79 = vcmp.eq.s32.totalorder %v55, 9
    %vm80 = vcmp.eq.s32.totalorder %v56, 9
    %vm81 = vmor %vm73, %vm77
    %vm82 = vmor %vm74, %vm78
    %vm83 = vmor %vm75, %vm79
    %vm84 = vmor %vm76, %vm80
    %v85 = vsel %vm81, 1, 0
    %v86 = vsel %vm82, 1, 0
    %v87 = vsel %vm83, 1, 0
    %v88 = vsel %vm84, 1, 0
    %vm89 = vcmp.eq.s32.totalorder %v85, 1
    %vm90 = vcmp.eq.s32.totalorder %v86, 1
    %vm91 = vcmp.eq.s32.totalorder %v87, 1
    %vm92 = vcmp.eq.s32.totalorder %v88, 1
    %v93 = vsel %vm89, %v28, %v69
    %v94 = vsel %vm90, %v29, %v70
    %v95 = vsel %vm91, %v30, %v71
    %v96 = vsel %vm92, %v31, %v72
    %vm97 = vcmp.eq.s32.totalorder %v53, 7
    %vm98 = vcmp.eq.s32.totalorder %v54, 7
    %vm99 = vcmp.eq.s32.totalorder %v55, 7
    %vm100 = vcmp.eq.s32.totalorder %v56, 7
    %v101 = vsel %vm97, 1, 0
    %v102 = vsel %vm98, 1, 0
    %v103 = vsel %vm99, 1, 0
    %v104 = vsel %vm100, 1, 0
    %vm105 = vcmp.eq.s32.totalorder %v101, 1
    %vm106 = vcmp.eq.s32.totalorder %v102, 1
    %vm107 = vcmp.eq.s32.totalorder %v103, 1
    %vm108 = vcmp.eq.s32.totalorder %v104, 1
    %v109 = vsel %vm105, %v40, %v93
    %v110 = vsel %vm106, %v41, %v94
    %v111 = vsel %vm107, %v42, %v95
    %v112 = vsel %vm108, %v43, %v96
    %vm113 = vcmp.eq.s32.totalorder %v53, 8
    %vm114 = vcmp.eq.s32.totalorder %v54, 8
    %vm115 = vcmp.eq.s32.totalorder %v55, 8
    %vm116 = vcmp.eq.s32.totalorder %v56, 8
    %v117 = vsel %vm113, 1, 0
    %v118 = vsel %vm114, 1, 0
    %v119 = vsel %vm115, 1, 0
    %v120 = vsel %vm116, 1, 0
    %vm121 = vcmp.eq.s32.totalorder %v117, 1
    %vm122 = vcmp.eq.s32.totalorder %v118, 1
    %vm123 = vcmp.eq.s32.totalorder %v119, 1
    %vm124 = vcmp.eq.s32.totalorder %v120, 1
    %v125 = vsel %vm121, %v44, %v109
    %v126 = vsel %vm122, %v45, %v110
    %v127 = vsel %vm123, %v46, %v111
    %v128 = vsel %vm124, %v47, %v112
    %129 = vst [vmem:[#allocation5] sm:$0xff] %v125
    %130 = vst [vmem:[#allocation5 + $0x8] sm:$0xff] %v126
    %131 = vst [vmem:[#allocation5 + $0x10] sm:$0xff] %v127
    %132 = vst [vmem:[#allocation5 + $0x18] sm:$0xff] %v128
    // Predicated region
    $region10: #{tpu_custom_call.1} parent=1 // pred_check
      _
    $region11: #{tpu_custom_call.1} parent=1 // pred_check_branch
      %134 = sbr.rel (0) target = $region13
    $region12: #{tpu_custom_call.1} parent=1 // pred_region
      %s136 = ssub.s32 512, 512
      %137 = vsyncadd [#allocation4], %s136
      %s138 = sshll.u32 [#allocation5], 4
      %s139 = int_to_ptr.vmem [resolvable:$true] %s138
      %144 = dma.vmem_to_hbm [thread:$0]  %s139, 512, %s1, [#allocation4], 128, 128, 8
    $region13: #{tpu_custom_call.1} parent=1 // pred_fallthru
      _
    // Predicated region
    $region14: #{tpu_custom_call.1} parent=1 // pred_check
      _
    $region15: #{tpu_custom_call.1} parent=1 // pred_check_branch
      %146 = sbr.rel (0) target = $region17
    $region16: #{tpu_custom_call.1} parent=1 // pred_region
      %147 = dma.done [#allocation4], 512
    $region17: #{tpu_custom_call.1} parent=1 // pred_fallthru
      _
    %148 = vsyncpa [#allocation3], 1
    %149 = vsyncpa [#allocation4], 1

</llo_original>
